<compile_context>
chip_gen: v7x
topology: tpu7x:2x2x1
jax: 0.10.0
libtpu: 0.0.40
codegen_flags: <defaults>
</compile_context>

<pallas_src>
import jax
import jax.numpy as jnp
from jax.experimental import pallas as pl
from jax.experimental.pallas import tpu as pltpu


def _fused_linear_bn_relu_kernel(x_ref, w_ref, ss_ref, o_ref):
    """One (i, j, k) grid step of relu((x @ W) * scale + shift).

    x_ref : (tm, tk) bf16
    w_ref : (tk, tn) bf16   (weights pre-transposed to [K, N] in the wrapper)
    ss_ref: (2,  tn) f32    row 0 = scale, row 1 = shift (folded bias + BN)
    o_ref : (tm, tn) f32    k-resident accumulator (same block for every k)
    """
    k = pl.program_id(2)

    @pl.when(k == 0)
    def _():
        o_ref[...] = jnp.zeros_like(o_ref)

    o_ref[...] += jnp.dot(
        x_ref[...], w_ref[...], preferred_element_type=jnp.float32
    )

    @pl.when(k == pl.num_programs(2) - 1)
    def _():
        ss = ss_ref[...]                      # (2, tn)
        y = o_ref[...] * ss[0:1, :] + ss[1:2, :]
        o_ref[...] = jnp.maximum(y, 0.0)


def _round_up(x, m):
    return ((x + m - 1) // m) * m


def _cdiv(a, b):
    return -(-a // b)


def _choose_tile(dim, cap, granule):
    """Balanced tile: multiple of `granule`, roughly <= cap, minimal padding."""
    cap = max(granule, (cap // granule) * granule)
    nblocks = _cdiv(dim, cap)
    return _round_up(_cdiv(dim, nblocks), granule)


def functional_linear_bn_relu(x, weights, bias, gamma, beta, running_mean,
                              running_var, *, eps=1e-3,
                              tm_cap=512, tn_cap=512, tk_cap=2048):
    """x: [M, K] f32; weights: [N, K] (PyTorch out,in layout); returns [M, N] f32."""
    M, K = x.shape
    N, K2 = weights.shape
    assert K == K2, "in_features mismatch between input and weights"

    # --- tile selection -----------------------------------------------------
    # bf16 operands: min tile (16, 128) -> tm granule 16; lanes (tk, tn) 128.
    tm = _choose_tile(M, tm_cap, 16)
    tn = _choose_tile(N, tn_cap, 128)
    tk = _choose_tile(K, tk_cap, 128)

    # v7x megacore: make sure at least one "parallel" axis has >= 2 blocks so
    # both TensorCores are fed (harmless elsewhere).
    if _cdiv(M, tm) * _cdiv(N, tn) == 1:
        if N > 128:
            tn = _choose_tile(N, max(128, tn // 2), 128)
        elif M > 16:
            tm = _choose_tile(M, max(16, tm // 2), 16)

    M_pad = _cdiv(M, tm) * tm
    N_pad = _cdiv(N, tn) * tn
    K_pad = _cdiv(K, tk) * tk

    # --- operand prep (bf16 matmul operands, folded BN epilogue) ------------
    # Fold: relu(((x@W.T + b) - mean) * gamma/sqrt(var+eps) + beta)
    #     = relu((x@W.T) * scale + shift)
    scale = (gamma * jax.lax.rsqrt(running_var + eps)).astype(jnp.float32)  # [N]
    shift = ((bias - running_mean) * scale + beta).astype(jnp.float32)      # [N]
    ss = jnp.stack([scale, shift], axis=0)                                  # [2, N]
    if N_pad != N:
        ss = jnp.pad(ss, ((0, 0), (0, N_pad - N)))

    x_b = x.astype(jnp.bfloat16)
    if (M_pad, K_pad) != (M, K):
        x_b = jnp.pad(x_b, ((0, M_pad - M), (0, K_pad - K)))

    # One-time [N,K] -> [K,N] transpose in XLA (amortized across calls when the
    # caller jits / reuses weights); avoids per-tile XLU transposes in-kernel.
    w_b = weights.T.astype(jnp.bfloat16)                                    # [K, N]
    if (K_pad, N_pad) != (K, N):
        w_b = jnp.pad(w_b, ((0, K_pad - K), (0, N_pad - N)))

    grid = (M_pad // tm, N_pad // tn, K_pad // tk)

    # --- VMEM budget (per-generation) ----------------------------------------
    try:
        vmem_cap = int(pltpu.get_tpu_info().vmem_capacity_bytes)
    except Exception:
        vmem_cap = 64 << 20  # conservative fallback
    vmem_budget = (vmem_cap * 3) // 4  # ~96 MiB on v5e/v6e, ~48 MiB on v7x

    tile_bytes = (
        2 * (tm * tk * 2)      # double-buffered bf16 x tile
        + 2 * (tk * tn * 2)    # double-buffered bf16 W tile
        + 2 * (tm * tn * 4)    # double-buffered f32 output/accumulator tile
        + 2 * (2 * tn * 4)     # double-buffered f32 scale/shift block
    )
    vmem_limit = int(min(max(2 * tile_bytes, 32 << 20), vmem_budget))

    out_pad = pl.pallas_call(
        _fused_linear_bn_relu_kernel,
        out_shape=jax.ShapeDtypeStruct((M_pad, N_pad), jnp.float32),
        grid_spec=pltpu.PrefetchScalarGridSpec(
            num_scalar_prefetch=0,
            grid=grid,
            in_specs=[
                pl.BlockSpec((tm, tk), lambda i, j, k: (i, k)),   # x tile
                pl.BlockSpec((tk, tn), lambda i, j, k: (k, j)),   # W tile ([K,N])
                pl.BlockSpec((2, tn), lambda i, j, k: (0, j)),    # scale/shift
            ],
            out_specs=pl.BlockSpec((tm, tn), lambda i, j, k: (i, j)),
        ),
        compiler_params=pltpu.CompilerParams(
            dimension_semantics=("parallel", "parallel", "arbitrary"),
            vmem_limit_bytes=vmem_limit,
        ),
    )(x_b, w_b, ss)

    if (M_pad, N_pad) != (M, N):
        out_pad = out_pad[:M, :N]
    return out_pad


def _reference(x, weights, bias, gamma, beta, running_mean, running_var, eps=1e-3):
    y = x @ weights.T + bias
    y = (y - running_mean) * (gamma * jax.lax.rsqrt(running_var + eps)) + beta
    return jnp.maximum(y, 0.0)


if __name__ == "__main__":
    M, K, N = 128, 256, 256  # batch, in_features, out_features (small demo)

    key = jax.random.PRNGKey(0)
    kx, kw, kb, kg, kbe, km, kv = jax.random.split(key, 7)

    x = jax.random.normal(kx, (M, K), dtype=jnp.float32)
    weights = jax.random.normal(kw, (N, K), dtype=jnp.float32) * 0.05  # [out, in]
    bias = jax.random.normal(kb, (N,), dtype=jnp.float32) * 0.1
    gamma = 1.0 + 0.1 * jax.random.normal(kg, (N,), dtype=jnp.float32)
    beta = 0.1 * jax.random.normal(kbe, (N,), dtype=jnp.float32)
    running_mean = 0.05 * jax.random.normal(km, (N,), dtype=jnp.float32)
    running_var = 1.0 + 0.1 * jax.nn.softplus(
        jax.random.normal(kv, (N,), dtype=jnp.float32))

    out = functional_linear_bn_relu(
        x, weights, bias, gamma, beta, running_mean, running_var
    )
    out = jax.block_until_ready(out)

    ref = _reference(x, weights, bias, gamma, beta, running_mean, running_var)
    assert out.shape == (M, N)
    # bf16 MXU operands vs f32 reference -> looser tolerance.
    assert jnp.allclose(out, ref, atol=5e-2, rtol=5e-2), "mismatch vs reference"

    print("KERNEL_OK")
</pallas_src>

<mosaic_0001>
module attributes {stable_mosaic.version = 11 : i64} {
  func.func @_fused_linear_bn_relu_kernel(%arg0: i32, %arg1: i32, %arg2: i32, %arg3: memref<128x256xbf16, #tpu.memory_space<vmem>>, %arg4: memref<256x128xbf16, #tpu.memory_space<vmem>>, %arg5: memref<2x128xf32, #tpu.memory_space<vmem>>, %arg6: memref<128x128xf32, #tpu.memory_space<vmem>>) attributes {dimension_semantics = [#tpu.dimension_semantics<parallel>, #tpu.dimension_semantics<parallel>, #tpu.dimension_semantics<arbitrary>], iteration_bounds = array<i64: 1, 2, 1>, scalar_prefetch = 0 : i64, scratch_operands = 0 : i64, tpu.core_type = #tpu.core_type<tc>, window_params = [{transform_indices = @transform_0, window_bounds = array<i64: 128, 256>}, {transform_indices = @transform_1, window_bounds = array<i64: 256, 128>}, {transform_indices = @transform_2, window_bounds = array<i64: 2, 128>}, {transform_indices = @transform_3, window_bounds = array<i64: 128, 128>}]} {
    %c0_i32 = arith.constant 0 : i32
    %0 = arith.cmpi eq, %arg2, %c0_i32 : i32
    %1 = arith.extui %0 : i1 to i32
    %c0_i32_0 = arith.constant 0 : i32
    %2 = arith.cmpi ne, %1, %c0_i32_0 : i32
    scf.if %2 {
      %cst_10 = arith.constant 0.000000e+00 : f32
      %12 = vector.broadcast %cst_10 : f32 to vector<128x128xf32>
      %c0_11 = arith.constant 0 : index
      %c0_12 = arith.constant 0 : index
      %13 = vector.load %arg6[%c0_11, %c0_12] : memref<128x128xf32, #tpu.memory_space<vmem>>, vector<128x128xf32>
      tpu.vector_store %arg6[%c0_11, %c0_12], %12 {strides = array<i32>} : memref<128x128xf32, #tpu.memory_space<vmem>>, vector<128x128xf32>,
    } else {
    }
    %c0 = arith.constant 0 : index
    %c0_1 = arith.constant 0 : index
    %3 = vector.load %arg6[%c0, %c0_1] : memref<128x128xf32, #tpu.memory_space<vmem>>, vector<128x128xf32>
    %c0_2 = arith.constant 0 : index
    %c0_3 = arith.constant 0 : index
    %4 = vector.load %arg3[%c0_2, %c0_3] : memref<128x256xbf16, #tpu.memory_space<vmem>>, vector<128x256xbf16>
    %c0_4 = arith.constant 0 : index
    %c0_5 = arith.constant 0 : index
    %5 = vector.load %arg4[%c0_4, %c0_5] : memref<256x128xbf16, #tpu.memory_space<vmem>>, vector<256x128xbf16>
    %cst = arith.constant dense<0.000000e+00> : vector<128x128xf32>
    %6 = tpu.matmul %4, %5, %cst {dimension_numbers = #tpu.dot_dimension_numbers<[1], [0], [0], [1], [0, 0, 1, 1], [], []>} : vector<128x256xbf16>, vector<256x128xbf16>, vector<128x128xf32> -> vector<128x128xf32>
    %7 = arith.addf %3, %6 : vector<128x128xf32>
    %c0_6 = arith.constant 0 : index
    %c0_7 = arith.constant 0 : index
    %8 = vector.load %arg6[%c0_6, %c0_7] : memref<128x128xf32, #tpu.memory_space<vmem>>, vector<128x128xf32>
    tpu.vector_store %arg6[%c0_6, %c0_7], %7 {strides = array<i32>} : memref<128x128xf32, #tpu.memory_space<vmem>>, vector<128x128xf32>,
    %c0_i32_8 = arith.constant 0 : i32
    %9 = arith.cmpi eq, %arg2, %c0_i32_8 : i32
    %10 = arith.extui %9 : i1 to i32
    %c0_i32_9 = arith.constant 0 : i32
    %11 = arith.cmpi ne, %10, %c0_i32_9 : i32
    scf.if %11 {
      %c0_10 = arith.constant 0 : index
      %c0_11 = arith.constant 0 : index
      %12 = vector.load %arg5[%c0_10, %c0_11] : memref<2x128xf32, #tpu.memory_space<vmem>>, vector<2x128xf32>
      %c0_12 = arith.constant 0 : index
      %c0_13 = arith.constant 0 : index
      %13 = vector.load %arg6[%c0_12, %c0_13] : memref<128x128xf32, #tpu.memory_space<vmem>>, vector<128x128xf32>
      %14 = vector.extract_strided_slice %12 {offsets = [0, 0], sizes = [1, 128], strides = [1, 1]} : vector<2x128xf32> to vector<1x128xf32>
      %15 = vector.broadcast %14 : vector<1x128xf32> to vector<128x128xf32>
      %16 = arith.mulf %13, %15 : vector<128x128xf32>
      %17 = vector.extract_strided_slice %12 {offsets = [1, 0], sizes = [1, 128], strides = [1, 1]} : vector<2x128xf32> to vector<1x128xf32>
      %18 = vector.broadcast %17 : vector<1x128xf32> to vector<128x128xf32>
      %19 = arith.addf %16, %18 : vector<128x128xf32>
      %cst_14 = arith.constant 0.000000e+00 : f32
      %20 = vector.broadcast %cst_14 : f32 to vector<128x128xf32>
      %21 = arith.maximumf %19, %20 : vector<128x128xf32>
      %c0_15 = arith.constant 0 : index
      %c0_16 = arith.constant 0 : index
      %22 = vector.load %arg6[%c0_15, %c0_16] : memref<128x128xf32, #tpu.memory_space<vmem>>, vector<128x128xf32>
      tpu.vector_store %arg6[%c0_15, %c0_16], %21 {strides = array<i32>} : memref<128x128xf32, #tpu.memory_space<vmem>>, vector<128x128xf32>,
    } else {
    }
    return
  }
  func.func @transform_0(%arg0: i32, %arg1: i32, %arg2: i32) -> (i32, i32) {
    %c0_i32 = arith.constant 0 : i32
    return %arg0, %arg2 : i32, i32
  }
  func.func @transform_1(%arg0: i32, %arg1: i32, %arg2: i32) -> (i32, i32) {
    %c0_i32 = arith.constant 0 : i32
    return %arg2, %arg1 : i32, i32
  }
  func.func @transform_2(%arg0: i32, %arg1: i32, %arg2: i32) -> (i32, i32) {
    %c0_i32 = arith.constant 0 : i32
    %c0_i32_0 = arith.constant 0 : i32
    return %c0_i32, %arg1 : i32, i32
  }
  func.func @transform_3(%arg0: i32, %arg1: i32, %arg2: i32) -> (i32, i32) {
    %c0_i32 = arith.constant 0 : i32
    return %arg0, %arg1 : i32, i32
  }
}

</mosaic_0001>

<llo_original>
// kernel: tpu_custom_call.1
$region0: #{tpu_custom_call.1}
  #allocation0 [shape = 'u32[]', space=smem, size = 0x4, offset = 0x4, fixed_abs, tag = 'smem constant byte address 0x4 - core index']
  #allocation1 [shape = 'u32[144,128]{1,0:T(1,128)}', space=vmem, size = 0x12000, scoped, tag = 'internal scratch']
  %s0 = inlined_call_operand.hbm [shape: bf16[128,256], index: 0, kind: input, shape index: {}]
  %s1 = inlined_call_operand.hbm [shape: bf16[256,256], index: 1, kind: input, shape index: {}]
  %s2 = inlined_call_operand.vmem [shape: f32[2,256], index: 2, kind: input, shape index: {}]
  %s3 = inlined_call_operand.hbm [shape: f32[128,256], index: 3, kind: output, shape index: {}]
  %s4 = sld [smem:[#allocation0]]
  $region61: #{tpu_custom_call.1} parent=0
    _
  %s6 = ssub.s32 1, %s4
  %s7 = scalar_select 0, %s6, %s4
  $region1: #{tpu_custom_call.1} parent=0
    #allocation2 [shape = 'u8[65536]{0}', space=vmem, size = 0x10000, scoped, tag = 'input window, operand 0, single buffered']
    #allocation3 [shape = 's32[2]{0}', space=sflag, size = 0x8, scoped, tag = 'scoped memory for tpu_custom_call.1']
    #allocation4 [shape = 's32[2]{0}', space=sflag, size = 0x8, scoped, tag = 'scoped memory for tpu_custom_call.1']
    #allocation5 [shape = 'u8[131072]{0}', space=vmem, size = 0x20000, scoped, tag = 'input window, operand 1']
    #allocation6 [shape = 's32[2]{0}', space=sflag, size = 0x8, scoped, tag = 'scoped memory for tpu_custom_call.1']
    #allocation7 [shape = 'u8[131072]{0}', space=vmem, size = 0x20000, scoped, tag = 'output window, operand 0']
    %8 = vsyncpa [#allocation3], 0
    %9 = vsyncpa [#allocation6], 0
    %s10 = scalar_lea.sflag [#allocation6], 1
    %11 = vsyncpa %s10, 0
    %12 = vsyncpa [#allocation4], 0
    %s13 = scalar_lea.sflag [#allocation4], 1
    %14 = vsyncpa %s13, 0
    loop: start=0, step=1, limit=4
    $region2: #{tpu_custom_call.1} parent=1 // loop_pre_header
      _
    $region3: #{tpu_custom_call.1} parent=1 // loop_header
      %s16 = sphi 0, %s20
      %p17 = scmp.ge.s32.totalorder %s16, 4
      %s23 = sphi 0, %s42
      %s24 = sphi 0, %s38
      %s25 = sphi 0, %s34
      %s26 = sphi 0, %s23
      %s27 = sphi 0, %s24
      %s28 = sphi 0, %s25
      %s29 = sphi 0, %s26
      %s30 = sphi 0, %s27
      %s31 = sphi 0, %s28
      %s47 = sphi 0, %s49
      %s50 = sphi 0, %s47
      %s51 = sphi 0, %s50
      %s67 = sphi 0, %s51
      %s75 = sphi 0, %s77
      %s78 = sphi 0, %s75
      %s79 = sphi 0, %s78
      %s95 = sphi 0, %s79
      %s101 = sphi 0, %s103
      %s104 = sphi 0, %s101
      %s105 = sphi 0, %s104
      %s121 = sphi 0, %s105
      %s129 = sphi 0, %s131
      %s132 = sphi 0, %s129
      %s133 = sphi 0, %s132
      %s149 = sphi 0, %s133
    $region4: #{tpu_custom_call.1} parent=1 // loop_header_branch
      %19 = sbr.rel (%p17) target = $region8
    $region5: #{tpu_custom_call.1} parent=1 // loop_body
      %s21 = ssub.s32 %s16, 1
      %s22 = ssub.s32 %s16, 2
      %s32 = sadd.s32 1, %s25
      %p33 = scmp.ge.s32.totalorder %s32, 1
      %s34 = scalar_select %p33, 0, %s32
      %s35 = sadd.s32 1, %s24
      %s36 = scalar_select %p33, %s35, %s24
      %p37 = scmp.ge.s32.totalorder %s36, 2
      %s38 = scalar_select %p37, 0, %s36
      %s39 = sadd.s32 1, %s23
      %s40 = scalar_select %p37, %s39, %s23
      %p41 = scmp.ge.s32.totalorder %s40, 1
      %s42 = scalar_select %p41, 0, %s40
      %s43 = ssub.s32 %s23, %s42
      %s44 = ssub.s32 %s25, %s34
      %s45 = sor.u32 %s43, %s44
      %p46 = scmp.eq.s32.totalorder %s45, 0
      %s48 = sadd.s32 %s47, 1
      %s49 = scalar_select %p46, %s47, %s48
      %p52 = pneg %p46
      %p53 = scmp.eq.s32.totalorder %s16, 1
      %p54 = por %p52, %p53
      %p55 = scmp.ne.s32.totalorder %s47, %s50
      %p56 = scmp.eq.s32.totalorder %s16, 0
      %p57 = por %p55, %p56
      %p58 = scmp.ne.s32.totalorder %s47, %s50
      %p59 = scmp.eq.s32.totalorder %s21, 1
      %p60 = por %p58, %p59
      %p61 = scmp.ne.s32.totalorder %s50, %s51
      %p62 = scmp.eq.s32.totalorder %s21, 0
      %p63 = por %p61, %p62
      %p64 = scmp.ne.s32.totalorder %s50, %s51
      %p65 = scmp.eq.s32.totalorder %s22, 1
      %p66 = por %p64, %p65
      %p68 = scmp.ne.s32.totalorder %s51, %s67
      %p69 = scmp.eq.s32.totalorder %s22, 0
      %p70 = por %p68, %p69
      %s71 = ssub.s32 %s25, %s34
      %s72 = ssub.s32 %s24, %s38
      %s73 = sor.u32 %s71, %s72
      %p74 = scmp.eq.s32.totalorder %s73, 0
      %s76 = sadd.s32 %s75, 1
      %s77 = scalar_select %p74, %s75, %s76
      %p80 = pneg %p74
      %p81 = scmp.eq.s32.totalorder %s16, 1
      %p82 = por %p80, %p81
      %p83 = scmp.ne.s32.totalorder %s75, %s78
      %p84 = scmp.eq.s32.totalorder %s16, 0
      %p85 = por %p83, %p84
      %p86 = scmp.ne.s32.totalorder %s75, %s78
      %p87 = scmp.eq.s32.totalorder %s21, 1
      %p88 = por %p86, %p87
      %p89 = scmp.ne.s32.totalorder %s78, %s79
      %p90 = scmp.eq.s32.totalorder %s21, 0
      %p91 = por %p89, %p90
      %p92 = scmp.ne.s32.totalorder %s78, %s79
      %p93 = scmp.eq.s32.totalorder %s22, 1
      %p94 = por %p92, %p93
      %p96 = scmp.ne.s32.totalorder %s79, %s95
      %p97 = scmp.eq.s32.totalorder %s22, 0
      %p98 = por %p96, %p97
      %s99 = ssub.s32 %s24, %s38
      %p100 = scmp.eq.s32.totalorder %s99, 0
      %s102 = sadd.s32 %s101, 1
      %s103 = scalar_select %p100, %s101, %s102
      %p106 = pneg %p100
      %p107 = scmp.eq.s32.totalorder %s16, 1
      %p108 = por %p106, %p107
      %p109 = scmp.ne.s32.totalorder %s101, %s104
      %p110 = scmp.eq.s32.totalorder %s16, 0
      %p111 = por %p109, %p110
      %p112 = scmp.ne.s32.totalorder %s101, %s104
      %p113 = scmp.eq.s32.totalorder %s21, 1
      %p114 = por %p112, %p113
      %p115 = scmp.ne.s32.totalorder %s104, %s105
      %p116 = scmp.eq.s32.totalorder %s21, 0
      %p117 = por %p115, %p116
      %p118 = scmp.ne.s32.totalorder %s104, %s105
      %p119 = scmp.eq.s32.totalorder %s22, 1
      %p120 = por %p118, %p119
      %p122 = scmp.ne.s32.totalorder %s105, %s121
      %p123 = scmp.eq.s32.totalorder %s22, 0
      %p124 = por %p122, %p123
      %s125 = ssub.s32 %s23, %s42
      %s126 = ssub.s32 %s24, %s38
      %s127 = sor.u32 %s125, %s126
      %p128 = scmp.eq.s32.totalorder %s127, 0
      %s130 = sadd.s32 %s129, 1
      %s131 = scalar_select %p128, %s129, %s130
      %p134 = pneg %p128
      %p135 = scmp.eq.s32.totalorder %s16, 1
      %p136 = por %p134, %p135
      %p137 = scmp.ne.s32.totalorder %s129, %s132
      %p138 = scmp.eq.s32.totalorder %s16, 0
      %p139 = por %p137, %p138
      %p140 = scmp.ne.s32.totalorder %s129, %s132
      %p141 = scmp.eq.s32.totalorder %s21, 1
      %p142 = por %p140, %p141
      %p143 = scmp.ne.s32.totalorder %s132, %s133
      %p144 = scmp.eq.s32.totalorder %s21, 0
      %p145 = por %p143, %p144
      %p146 = scmp.ne.s32.totalorder %s132, %s133
      %p147 = scmp.eq.s32.totalorder %s22, 1
      %p148 = por %p146, %p147
      %p150 = scmp.ne.s32.totalorder %s133, %s149
      %p151 = scmp.eq.s32.totalorder %s22, 0
      %p152 = por %p150, %p151
      %p153 = scmp.le.s32.totalorder 1, %s16
      %p154 = scmp.lt.s32.totalorder %s16, 3
      %p155 = pnand %p153, %p154
      %p156 = pneg %p155
      // Predicated region
      $region9: #{tpu_custom_call.1} parent=5 // pred_check
        _
      $region10: #{tpu_custom_call.1} parent=5 // pred_check_branch
        %158 = sbr.rel (%p155) target = $region12
      $region11: #{tpu_custom_call.1} parent=5 // pred_region
        %s159 = ssub.s32 %s16, 1
        // Predicated region
        $region13: #{tpu_custom_call.1} parent=11 // pred_check
          %p160 = pneg %p63
        $region14: #{tpu_custom_call.1} parent=11 // pred_check_branch
          %162 = sbr.rel (%p160) target = $region16
        $region15: #{tpu_custom_call.1} parent=11 // pred_region
          %s163 = smul.u32 16, %s26
          %s164 = smul.u32 2, %s28
          %s166 = ssub.s32 2048, 2048
          %167 = vsyncadd [#allocation3], %s166
          %s168 = smul.addr %s163, 2
          %s169 = sadd.s32 %s164, %s168
          %s170 = smul.addr %s169, 64
          %s171 = scalar_lea.hbm %s0, %s170
          %s172 = sshll.u32 [#allocation2], 4
          %s173 = int_to_ptr.vmem [resolvable:$true] %s172
          %178 = dma.hbm_to_vmem [thread:$0]  %s171, 2048, %s173, [#allocation3], 128, 128, 8
        $region16: #{tpu_custom_call.1} parent=11 // pred_fallthru
          _
      $region12: #{tpu_custom_call.1} parent=5 // pred_fallthru
        _
      %p179 = scmp.lt.s32.totalorder %s16, 2
      // Predicated region
      $region17: #{tpu_custom_call.1} parent=5 // pred_check
        %p180 = pneg %p179
      $region18: #{tpu_custom_call.1} parent=5 // pred_check_branch
        %182 = sbr.rel (%p180) target = $region20
      $region19: #{tpu_custom_call.1} parent=5 // pred_region
        // Predicated region
        $region21: #{tpu_custom_call.1} parent=19 // pred_check
          %p183 = pneg %p85
        $region22: #{tpu_custom_call.1} parent=19 // pred_check_branch
          %185 = sbr.rel (%p183) target = $region24
        $region23: #{tpu_custom_call.1} parent=19 // pred_region
          %s186 = sand.u32 %s75, 1
          %s187 = scalar_lea.sflag [#allocation6], %s186
          %s188 = sand.u32 %s75, 1
          %s189 = smul.addr %s188, 128
          %s190 = scalar_lea.vmem [#allocation5], %s189
          %s191 = smul.u32 32, %s25
          %s193 = ssub.s32 2048, 2048
          %194 = vsyncadd %s187, %s193
          %s195 = smul.addr %s191, 2
          %s196 = sadd.s32 %s24, %s195
          %s197 = smul.addr %s196, 64
          %s198 = scalar_lea.hbm %s1, %s197
          %s199 = sshll.u32 %s190, 4
          %s200 = int_to_ptr.vmem [resolvable:$true] %s199
          %205 = dma.hbm_to_vmem [thread:$0]  %s198, 2048, %s200, %s187, 128, 64, 4
        $region24: #{tpu_custom_call.1} parent=19 // pred_fallthru
          _
        // Predicated region
        $region25: #{tpu_custom_call.1} parent=19 // pred_check
          %p206 = pneg %p111
        $region26: #{tpu_custom_call.1} parent=19 // pred_check_branch
          %208 = sbr.rel (%p206) target = $region28
        $region27: #{tpu_custom_call.1} parent=19 // pred_region
          %p209 = scmp.lt.s32.totalorder %s24, 1
          %s210 = scalar_select %p209, %s24, 1
          %s211 = smul.addr %s210, 2
          %s212 = scalar_lea.vmem %s2, %s211
        $region28: #{tpu_custom_call.1} parent=19 // pred_fallthru
          _
      $region20: #{tpu_custom_call.1} parent=5 // pred_fallthru
        _
      %p213 = scmp.le.s32.totalorder 1, %s16
      %p214 = scmp.lt.s32.totalorder %s16, 3
      %p215 = pnand %p213, %p214
      %p216 = pneg %p215
      // Predicated region
      $region29: #{tpu_custom_call.1} parent=5 // pred_check
        _
      $region30: #{tpu_custom_call.1} parent=5 // pred_check_branch
        %218 = sbr.rel (%p215) target = $region32
      $region31: #{tpu_custom_call.1} parent=5 // pred_region
        %s219 = ssub.s32 %s16, 1
        // Predicated region
        $region33: #{tpu_custom_call.1} parent=31 // pred_check
          %p220 = pneg %p63
        $region34: #{tpu_custom_call.1} parent=31 // pred_check_branch
          %222 = sbr.rel (%p220) target = $region36
        $region35: #{tpu_custom_call.1} parent=31 // pred_region
          %223 = dma.done [#allocation3], 2048
        $region36: #{tpu_custom_call.1} parent=31 // pred_fallthru
          _
        %s224 = sand.u32 %s78, 1
        %s225 = scalar_lea.sflag [#allocation6], %s224
        %s226 = sand.u32 %s78, 1
        %s227 = smul.addr %s226, 128
        %s228 = scalar_lea.vmem [#allocation5], %s227
        // Predicated region
        $region37: #{tpu_custom_call.1} parent=31 // pred_check
          %p229 = pneg %p91
        $region38: #{tpu_custom_call.1} parent=31 // pred_check_branch
          %231 = sbr.rel (%p229) target = $region40
        $region39: #{tpu_custom_call.1} parent=31 // pred_region
          %232 = dma.done %s225, 2048
        $region40: #{tpu_custom_call.1} parent=31 // pred_fallthru
          _
        %p233 = pneg %p63
        %p234 = pneg %p60
        %s235 = sand.u32 %s78, 1
        %s236 = scalar_lea.sflag [#allocation6], %s235
        %s237 = sand.u32 %s78, 1
        %s238 = smul.addr %s237, 128
        %s239 = scalar_lea.vmem [#allocation5], %s238
        %p240 = pneg %p91
        %p241 = pneg %p88
        %p242 = scmp.lt.s32.totalorder %s27, 1
        %s243 = scalar_select %p242, %s27, 1
        %s244 = smul.addr %s243, 2
        %s245 = scalar_lea.vmem %s2, %s244
        %p246 = pneg %p117
        %p247 = pneg %p114
        %p248 = pneg %p145
        %p249 = pneg %p142
        %s250 = sand.u32 %s132, 1
        %s251 = scalar_lea.sflag [#allocation4], %s250
        %s252 = sand.u32 %s132, 1
        %s253 = smul.addr %s252, 128
        %s254 = scalar_lea.vmem [#allocation7], %s253
        %s255 = smul.u32 16, %s26
        %s256 = smul.u32 2, %s28
        %s257 = smul.u32 32, %s28
        %p258 = scmp.lt.s32.totalorder %s27, 1
        %s259 = scalar_select %p258, %s27, 1
        %s260 = smul.addr %s259, 2
        %s261 = scalar_lea.vmem %s2, %s260
        %s262 = smul.u32 16, %s26
        %p264 = scmp.eq.s32.totalorder %s28, 0
        // Predicated region
        $region41: #{tpu_custom_call.1} parent=31 // pred_check
          %p265 = pneg %p264
        $region42: #{tpu_custom_call.1} parent=31 // pred_check_branch
          %267 = sbr.rel (%p265) target = $region44
        $region43: #{tpu_custom_call.1} parent=31 // pred_region
          %268 = vst [vmem:[%s254] sm:$0xff] 0.0
          %269 = vst [vmem:[%s254 + $0x8] sm:$0xff] 0.0
          %270 = vst [vmem:[%s254 + $0x10] sm:$0xff] 0.0
          %271 = vst [vmem:[%s254 + $0x18] sm:$0xff] 0.0
          %272 = vst [vmem:[%s254 + $0x20] sm:$0xff] 0.0
          %273 = vst [vmem:[%s254 + $0x28] sm:$0xff] 0.0
          %274 = vst [vmem:[%s254 + $0x30] sm:$0xff] 0.0
          %275 = vst [vmem:[%s254 + $0x38] sm:$0xff] 0.0
          %276 = vst [vmem:[%s254 + $0x40] sm:$0xff] 0.0
          %277 = vst [vmem:[%s254 + $0x48] sm:$0xff] 0.0
          %278 = vst [vmem:[%s254 + $0x50] sm:$0xff] 0.0
          %279 = vst [vmem:[%s254 + $0x58] sm:$0xff] 0.0
          %280 = vst [vmem:[%s254 + $0x60] sm:$0xff] 0.0
          %281 = vst [vmem:[%s254 + $0x68] sm:$0xff] 0.0
          %282 = vst [vmem:[%s254 + $0x70] sm:$0xff] 0.0
          %283 = vst [vmem:[%s254 + $0x78] sm:$0xff] 0.0
        $region44: #{tpu_custom_call.1} parent=31 // pred_fallthru
          _
        %v284 = vld [vmem:[%s254] sm:$0xff]
        %v285 = vld [vmem:[%s254 + $0x8] sm:$0xff]
        %v286 = vld [vmem:[%s254 + $0x10] sm:$0xff]
        %v287 = vld [vmem:[%s254 + $0x18] sm:$0xff]
        %v288 = vld [vmem:[%s254 + $0x20] sm:$0xff]
        %v289 = vld [vmem:[%s254 + $0x28] sm:$0xff]
        %v290 = vld [vmem:[%s254 + $0x30] sm:$0xff]
        %v291 = vld [vmem:[%s254 + $0x38] sm:$0xff]
        %v292 = vld [vmem:[%s254 + $0x40] sm:$0xff]
        %v293 = vld [vmem:[%s254 + $0x48] sm:$0xff]
        %v294 = vld [vmem:[%s254 + $0x50] sm:$0xff]
        %v295 = vld [vmem:[%s254 + $0x58] sm:$0xff]
        %v296 = vld [vmem:[%s254 + $0x60] sm:$0xff]
        %v297 = vld [vmem:[%s254 + $0x68] sm:$0xff]
        %v298 = vld [vmem:[%s254 + $0x70] sm:$0xff]
        %v299 = vld [vmem:[%s254 + $0x78] sm:$0xff]
        %v300 = vld [vmem:[#allocation2] sm:$0xff]
        %v301 = vld [vmem:[#allocation2 + $0x8] sm:$0xff]
        %v302 = vld [vmem:[#allocation2 + $0x10] sm:$0xff]
        %v303 = vld [vmem:[#allocation2 + $0x18] sm:$0xff]
        %v304 = vld [vmem:[#allocation2 + $0x20] sm:$0xff]
        %v305 = vld [vmem:[#allocation2 + $0x28] sm:$0xff]
        %v306 = vld [vmem:[#allocation2 + $0x30] sm:$0xff]
        %v307 = vld [vmem:[#allocation2 + $0x38] sm:$0xff]
        %v308 = vld [vmem:[#allocation2 + $0x40] sm:$0xff]
        %v309 = vld [vmem:[#allocation2 + $0x48] sm:$0xff]
        %v310 = vld [vmem:[#allocation2 + $0x50] sm:$0xff]
        %v311 = vld [vmem:[#allocation2 + $0x58] sm:$0xff]
        %v312 = vld [vmem:[#allocation2 + $0x60] sm:$0xff]
        %v313 = vld [vmem:[#allocation2 + $0x68] sm:$0xff]
        %v314 = vld [vmem:[#allocation2 + $0x70] sm:$0xff]
        %v315 = vld [vmem:[#allocation2 + $0x78] sm:$0xff]
        %v316 = vld [vmem:[%s228] sm:$0xf]
        %v317 = vld [vmem:[%s228 + $0x4] sm:$0xf]
        %v318 = vld [vmem:[%s228 + $0x8] sm:$0xf]
        %v319 = vld [vmem:[%s228 + $0xc] sm:$0xf]
        %v320 = vld [vmem:[%s228 + $0x10] sm:$0xf]
        %v321 = vld [vmem:[%s228 + $0x14] sm:$0xf]
        %v322 = vld [vmem:[%s228 + $0x18] sm:$0xf]
        %v323 = vld [vmem:[%s228 + $0x1c] sm:$0xf]
        %v324 = vld [vmem:[%s228 + $0x20] sm:$0xf]
        %v325 = vld [vmem:[%s228 + $0x24] sm:$0xf]
        %v326 = vld [vmem:[%s228 + $0x28] sm:$0xf]
        %v327 = vld [vmem:[%s228 + $0x2c] sm:$0xf]
        %v328 = vld [vmem:[%s228 + $0x30] sm:$0xf]
        %v329 = vld [vmem:[%s228 + $0x34] sm:$0xf]
        %v330 = vld [vmem:[%s228 + $0x38] sm:$0xf]
        %v331 = vld [vmem:[%s228 + $0x3c] sm:$0xf]
        %v332 = vld [vmem:[%s228 + $0x40] sm:$0xf]
        %v333 = vld [vmem:[%s228 + $0x44] sm:$0xf]
        %v334 = vld [vmem:[%s228 + $0x48] sm:$0xf]
        %v335 = vld [vmem:[%s228 + $0x4c] sm:$0xf]
        %v336 = vld [vmem:[%s228 + $0x50] sm:$0xf]
        %v337 = vld [vmem:[%s228 + $0x54] sm:$0xf]
        %v338 = vld [vmem:[%s228 + $0x58] sm:$0xf]
        %v339 = vld [vmem:[%s228 + $0x5c] sm:$0xf]
        %v340 = vld [vmem:[%s228 + $0x60] sm:$0xf]
        %v341 = vld [vmem:[%s228 + $0x64] sm:$0xf]
        %v342 = vld [vmem:[%s228 + $0x68] sm:$0xf]
        %v343 = vld [vmem:[%s228 + $0x6c] sm:$0xf]
        %v344 = vld [vmem:[%s228 + $0x70] sm:$0xf]
        %v345 = vld [vmem:[%s228 + $0x74] sm:$0xf]
        %v346 = vld [vmem:[%s228 + $0x78] sm:$0xf]
        %v347 = vld [vmem:[%s228 + $0x7c] sm:$0xf]
        %v364 = vunpack.c.l.b16 %v300
        %v365 = vunpack.c.h.b16 %v300
        %v366 = vunpack.c.l.b16 %v301
        %v367 = vunpack.c.h.b16 %v301
        %v368 = vunpack.c.l.b16 %v302
        %v369 = vunpack.c.h.b16 %v302
        %v370 = vunpack.c.l.b16 %v303
        %v371 = vunpack.c.h.b16 %v303
        %v372 = vunpack.c.l.b16 %v304
        %v373 = vunpack.c.h.b16 %v304
        %v374 = vunpack.c.l.b16 %v305
        %v375 = vunpack.c.h.b16 %v305
        %v376 = vunpack.c.l.b16 %v306
        %v377 = vunpack.c.h.b16 %v306
        %v378 = vunpack.c.l.b16 %v307
        %v379 = vunpack.c.h.b16 %v307
        %v380 = vunpack.c.l.b16 %v308
        %v381 = vunpack.c.h.b16 %v308
        %v382 = vunpack.c.l.b16 %v309
        %v383 = vunpack.c.h.b16 %v309
        %v384 = vunpack.c.l.b16 %v310
        %v385 = vunpack.c.h.b16 %v310
        %v386 = vunpack.c.l.b16 %v311
        %v387 = vunpack.c.h.b16 %v311
        %v388 = vunpack.c.l.b16 %v312
        %v389 = vunpack.c.h.b16 %v312
        %v390 = vunpack.c.l.b16 %v313
        %v391 = vunpack.c.h.b16 %v313
        %v392 = vunpack.c.l.b16 %v314
        %v393 = vunpack.c.h.b16 %v314
        %v394 = vunpack.c.l.b16 %v315
        %v395 = vunpack.c.h.b16 %v315
        %v396 = vpack.c.b16 %v366, %v364
        %v397 = vpack.c.b16 %v367, %v365
        %v398 = vpack.c.b16 %v370, %v368
        %v399 = vpack.c.b16 %v371, %v369
        %v400 = vpack.c.b16 %v374, %v372
        %v401 = vpack.c.b16 %v375, %v373
        %v402 = vpack.c.b16 %v378, %v376
        %v403 = vpack.c.b16 %v379, %v377
        %v404 = vpack.c.b16 %v382, %v380
        %v405 = vpack.c.b16 %v383, %v381
        %v406 = vpack.c.b16 %v386, %v384
        %v407 = vpack.c.b16 %v387, %v385
        %v408 = vpack.c.b16 %v390, %v388
        %v409 = vpack.c.b16 %v391, %v389
        %v410 = vpack.c.b16 %v394, %v392
        %v411 = vpack.c.b16 %v395, %v393
        %v460 = vunpack.c.l.b16 %v316
        %v461 = vunpack.c.l.b16 %v317
        %v462 = vunpack.c.l.b16 %v318
        %v463 = vunpack.c.l.b16 %v319
        %v464 = vunpack.c.l.b16 %v320
        %v465 = vunpack.c.l.b16 %v321
        %v466 = vunpack.c.l.b16 %v322
        %v467 = vunpack.c.l.b16 %v323
        %v468 = vunpack.c.l.b16 %v324
        %v469 = vunpack.c.l.b16 %v325
        %v470 = vunpack.c.l.b16 %v326
        %v471 = vunpack.c.l.b16 %v327
        %v472 = vunpack.c.l.b16 %v328
        %v473 = vunpack.c.l.b16 %v329
        %v474 = vunpack.c.l.b16 %v330
        %v475 = vunpack.c.l.b16 %v331
        %v476 = vunpack.c.l.b16 %v332
        %v477 = vunpack.c.l.b16 %v333
        %v478 = vunpack.c.l.b16 %v334
        %v479 = vunpack.c.l.b16 %v335
        %v480 = vunpack.c.l.b16 %v336
        %v481 = vunpack.c.l.b16 %v337
        %v482 = vunpack.c.l.b16 %v338
        %v483 = vunpack.c.l.b16 %v339
        %v484 = vunpack.c.l.b16 %v340
        %v485 = vunpack.c.l.b16 %v341
        %v486 = vunpack.c.l.b16 %v342
        %v487 = vunpack.c.l.b16 %v343
        %v488 = vunpack.c.l.b16 %v344
        %v489 = vunpack.c.l.b16 %v345
        %v490 = vunpack.c.l.b16 %v346
        %v491 = vunpack.c.l.b16 %v347
        %v492 = vpack.c.b16 %v461, %v460
        %v493 = vpack.c.b16 %v463, %v462
        %v494 = vpack.c.b16 %v465, %v464
        %v495 = vpack.c.b16 %v467, %v466
        %v496 = vpack.c.b16 %v469, %v468
        %v497 = vpack.c.b16 %v471, %v470
        %v498 = vpack.c.b16 %v473, %v472
        %v499 = vpack.c.b16 %v475, %v474
        %v500 = vpack.c.b16 %v477, %v476
        %v501 = vpack.c.b16 %v479, %v478
        %v502 = vpack.c.b16 %v481, %v480
        %v503 = vpack.c.b16 %v483, %v482
        %v504 = vpack.c.b16 %v485, %v484
        %v505 = vpack.c.b16 %v487, %v486
        %v506 = vpack.c.b16 %v489, %v488
        %v507 = vpack.c.b16 %v491, %v490
        %524 = vmatprep.subr.bf16.mxu0 0
        %525 = vmatpush1.bf16.msra.mxu0 %v492
        %526 = vmatprep.subr.bf16.mxu0 0
        %527 = vmatpush1.bf16.msra.mxu0 %v493
        %528 = vmatprep.subr.bf16.mxu0 0
        %529 = vmatpush1.bf16.msra.mxu0 %v494
        %530 = vmatprep.subr.bf16.mxu0 0
        %531 = vmatpush1.bf16.msra.mxu0 %v495
        %532 = vmatprep.subr.bf16.mxu0 0
        %533 = vmatpush1.bf16.msra.mxu0 %v496
        %534 = vmatprep.subr.bf16.mxu0 0
        %535 = vmatpush1.bf16.msra.mxu0 %v497
        %536 = vmatprep.subr.bf16.mxu0 0
        %537 = vmatpush1.bf16.msra.mxu0 %v498
        %538 = vmatprep.subr.bf16.mxu0 0
        %539 = vmatpush1.bf16.msra.mxu0 %v499
        %540 = vmatprep.subr.bf16.mxu0 0
        %541 = vmatpush1.bf16.msra.mxu0 %v500
        %542 = vmatprep.subr.bf16.mxu0 0
        %543 = vmatpush1.bf16.msra.mxu0 %v501
        %544 = vmatprep.subr.bf16.mxu0 0
        %545 = vmatpush1.bf16.msra.mxu0 %v502
        %546 = vmatprep.subr.bf16.mxu0 0
        %547 = vmatpush1.bf16.msra.mxu0 %v503
        %548 = vmatprep.subr.bf16.mxu0 0
        %549 = vmatpush1.bf16.msra.mxu0 %v504
        %550 = vmatprep.subr.bf16.mxu0 0
        %551 = vmatpush1.bf16.msra.mxu0 %v505
        %552 = vmatprep.subr.bf16.mxu0 0
        %553 = vmatpush1.bf16.msra.mxu0 %v506
        %554 = vmatprep.subr.bf16.mxu0 0
        %555 = vmatpush1.bf16.msra.mxu0 %v507
        %556 = vmatprep.mubr.bf16.mxu0 %v397
        %557 = vmatmul.mubr.bf16.gmra.mrb[0].mxu0 %v396
        %v558 = vpop.f32.mrb[0].mxu0
        %v559 = vadd.f32 0.0, %v558
        %v560 = vpop.f32.mrb[0].mxu0
        %v561 = vpop.f32.mrb[0].mxu0
        %v562 = vadd.f32 0.0, %v561
        %v563 = vpop.f32.mrb[0].mxu0
        %564 = vmatprep.mubr.bf16.mxu0 %v399
        %565 = vmatmul.mubr.bf16.gmra.mrb[0].mxu0 %v398
        %v566 = vpop.f32.mrb[0].mxu0
        %v567 = vadd.f32 0.0, %v566
        %v568 = vpop.f32.mrb[0].mxu0
        %v569 = vpop.f32.mrb[0].mxu0
        %v570 = vadd.f32 0.0, %v569
        %v571 = vpop.f32.mrb[0].mxu0
        %572 = vmatprep.mubr.bf16.mxu0 %v401
        %573 = vmatmul.mubr.bf16.gmra.mrb[0].mxu0 %v400
        %v574 = vpop.f32.mrb[0].mxu0
        %v575 = vadd.f32 0.0, %v574
        %v576 = vpop.f32.mrb[0].mxu0
        %v577 = vpop.f32.mrb[0].mxu0
        %v578 = vadd.f32 0.0, %v577
        %v579 = vpop.f32.mrb[0].mxu0
        %580 = vmatprep.mubr.bf16.mxu0 %v403
        %581 = vmatmul.mubr.bf16.gmra.mrb[0].mxu0 %v402
        %v582 = vpop.f32.mrb[0].mxu0
        %v583 = vadd.f32 0.0, %v582
        %v584 = vpop.f32.mrb[0].mxu0
        %v585 = vpop.f32.mrb[0].mxu0
        %v586 = vadd.f32 0.0, %v585
        %v587 = vpop.f32.mrb[0].mxu0
        %588 = vmatprep.mubr.bf16.mxu0 %v405
        %589 = vmatmul.mubr.bf16.gmra.mrb[0].mxu0 %v404
        %v590 = vpop.f32.mrb[0].mxu0
        %v591 = vadd.f32 0.0, %v590
        %v592 = vpop.f32.mrb[0].mxu0
        %v593 = vpop.f32.mrb[0].mxu0
        %v594 = vadd.f32 0.0, %v593
        %v595 = vpop.f32.mrb[0].mxu0
        %596 = vmatprep.mubr.bf16.mxu0 %v407
        %597 = vmatmul.mubr.bf16.gmra.mrb[0].mxu0 %v406
        %v598 = vpop.f32.mrb[0].mxu0
        %v599 = vadd.f32 0.0, %v598
        %v600 = vpop.f32.mrb[0].mxu0
        %v601 = vpop.f32.mrb[0].mxu0
        %v602 = vadd.f32 0.0, %v601
        %v603 = vpop.f32.mrb[0].mxu0
        %604 = vmatprep.mubr.bf16.mxu0 %v409
        %605 = vmatmul.mubr.bf16.gmra.mrb[0].mxu0 %v408
        %v606 = vpop.f32.mrb[0].mxu0
        %v607 = vadd.f32 0.0, %v606
        %v608 = vpop.f32.mrb[0].mxu0
        %v609 = vpop.f32.mrb[0].mxu0
        %v610 = vadd.f32 0.0, %v609
        %v611 = vpop.f32.mrb[0].mxu0
        %612 = vmatprep.mubr.bf16.mxu0 %v411
        %613 = vmatmul.mubr.bf16.gmra.mrb[0].mxu0 %v410
        %v614 = vpop.f32.mrb[0].mxu0
        %v615 = vadd.f32 0.0, %v614
        %v616 = vpop.f32.mrb[0].mxu0
        %v617 = vpop.f32.mrb[0].mxu0
        %v618 = vadd.f32 0.0, %v617
        %v619 = vpop.f32.mrb[0].mxu0
        %620 = vdwg.mxu0
        %v621 = vadd.f32 %v284, %v559
        %v622 = vadd.f32 %v285, %v562
        %v623 = vadd.f32 %v286, %v567
        %v624 = vadd.f32 %v287, %v570
        %v625 = vadd.f32 %v288, %v575
        %v626 = vadd.f32 %v289, %v578
        %v627 = vadd.f32 %v290, %v583
        %v628 = vadd.f32 %v291, %v586
        %v629 = vadd.f32 %v292, %v591
        %v630 = vadd.f32 %v293, %v594
        %v631 = vadd.f32 %v294, %v599
        %v632 = vadd.f32 %v295, %v602
        %v633 = vadd.f32 %v296, %v607
        %v634 = vadd.f32 %v297, %v610
        %v635 = vadd.f32 %v298, %v615
        %v636 = vadd.f32 %v299, %v618
        %637 = vst [vmem:[%s254] sm:$0xff] %v621
        %638 = vst [vmem:[%s254 + $0x8] sm:$0xff] %v622
        %639 = vst [vmem:[%s254 + $0x10] sm:$0xff] %v623
        %640 = vst [vmem:[%s254 + $0x18] sm:$0xff] %v624
        %641 = vst [vmem:[%s254 + $0x20] sm:$0xff] %v625
        %642 = vst [vmem:[%s254 + $0x28] sm:$0xff] %v626
        %643 = vst [vmem:[%s254 + $0x30] sm:$0xff] %v627
        %644 = vst [vmem:[%s254 + $0x38] sm:$0xff] %v628
        %645 = vst [vmem:[%s254 + $0x40] sm:$0xff] %v629
        %646 = vst [vmem:[%s254 + $0x48] sm:$0xff] %v630
        %647 = vst [vmem:[%s254 + $0x50] sm:$0xff] %v631
        %648 = vst [vmem:[%s254 + $0x58] sm:$0xff] %v632
        %649 = vst [vmem:[%s254 + $0x60] sm:$0xff] %v633
        %650 = vst [vmem:[%s254 + $0x68] sm:$0xff] %v634
        %651 = vst [vmem:[%s254 + $0x70] sm:$0xff] %v635
        %652 = vst [vmem:[%s254 + $0x78] sm:$0xff] %v636
        // Predicated region
        $region45: #{tpu_custom_call.1} parent=31 // pred_check
          %p653 = pneg %p264
        $region46: #{tpu_custom_call.1} parent=31 // pred_check_branch
          %655 = sbr.rel (%p653) target = $region48
        $region47: #{tpu_custom_call.1} parent=31 // pred_region
          %v656 = vld [vmem:[%s261] sm:$0x3]
          %v657 = vld [vmem:[%s254] sm:$0xff]
          %v658 = vld [vmem:[%s254 + $0x8] sm:$0xff]
          %v659 = vld [vmem:[%s254 + $0x10] sm:$0xff]
          %v660 = vld [vmem:[%s254 + $0x18] sm:$0xff]
          %v661 = vld [vmem:[%s254 + $0x20] sm:$0xff]
          %v662 = vld [vmem:[%s254 + $0x28] sm:$0xff]
          %v663 = vld [vmem:[%s254 + $0x30] sm:$0xff]
          %v664 = vld [vmem:[%s254 + $0x38] sm:$0xff]
          %v665 = vld [vmem:[%s254 + $0x40] sm:$0xff]
          %v666 = vld [vmem:[%s254 + $0x48] sm:$0xff]
          %v667 = vld [vmem:[%s254 + $0x50] sm:$0xff]
          %v668 = vld [vmem:[%s254 + $0x58] sm:$0xff]
          %v669 = vld [vmem:[%s254 + $0x60] sm:$0xff]
          %v670 = vld [vmem:[%s254 + $0x68] sm:$0xff]
          %v671 = vld [vmem:[%s254 + $0x70] sm:$0xff]
          %v672 = vld [vmem:[%s254 + $0x78] sm:$0xff]
          %v673 = vlaneseq
          %v674 = vshrl.u32 %v673, 7
          %v675 = vsub.s32 0, %v674
          %v676 = vrot.slane %v656, %v675
          %v677 = vmul.f32 %v657, %v676
          %v678 = vmul.f32 %v658, %v676
          %v679 = vmul.f32 %v659, %v676
          %v680 = vmul.f32 %v660, %v676
          %v681 = vmul.f32 %v661, %v676
          %v682 = vmul.f32 %v662, %v676
          %v683 = vmul.f32 %v663, %v676
          %v684 = vmul.f32 %v664, %v676
          %v685 = vmul.f32 %v665, %v676
          %v686 = vmul.f32 %v666, %v676
          %v687 = vmul.f32 %v667, %v676
          %v688 = vmul.f32 %v668, %v676
          %v689 = vmul.f32 %v669, %v676
          %v690 = vmul.f32 %v670, %v676
          %v691 = vmul.f32 %v671, %v676
          %v692 = vmul.f32 %v672, %v676
          %v693 = vlaneseq
          %v694 = vshrl.u32 %v693, 7
          %v695 = vsub.s32 1, %v694
          %v696 = vrot.slane %v656, %v695
          %v697 = vadd.f32 %v677, %v696
          %v698 = vadd.f32 %v678, %v696
          %v699 = vadd.f32 %v679, %v696
          %v700 = vadd.f32 %v680, %v696
          %v701 = vadd.f32 %v681, %v696
          %v702 = vadd.f32 %v682, %v696
          %v703 = vadd.f32 %v683, %v696
          %v704 = vadd.f32 %v684, %v696
          %v705 = vadd.f32 %v685, %v696
          %v706 = vadd.f32 %v686, %v696
          %v707 = vadd.f32 %v687, %v696
          %v708 = vadd.f32 %v688, %v696
          %v709 = vadd.f32 %v689, %v696
          %v710 = vadd.f32 %v690, %v696
          %v711 = vadd.f32 %v691, %v696
          %v712 = vadd.f32 %v692, %v696
          %v713 = vmax.f32 %v697, 0.0
          %v714 = vmax.f32 %v698, 0.0
          %v715 = vmax.f32 %v699, 0.0
          %v716 = vmax.f32 %v700, 0.0
          %v717 = vmax.f32 %v701, 0.0
          %v718 = vmax.f32 %v702, 0.0
          %v719 = vmax.f32 %v703, 0.0
          %v720 = vmax.f32 %v704, 0.0
          %v721 = vmax.f32 %v705, 0.0
          %v722 = vmax.f32 %v706, 0.0
          %v723 = vmax.f32 %v707, 0.0
          %v724 = vmax.f32 %v708, 0.0
          %v725 = vmax.f32 %v709, 0.0
          %v726 = vmax.f32 %v710, 0.0
          %v727 = vmax.f32 %v711, 0.0
          %v728 = vmax.f32 %v712, 0.0
          %729 = vst [vmem:[%s254] sm:$0xff] %v713
          %730 = vst [vmem:[%s254 + $0x8] sm:$0xff] %v714
          %731 = vst [vmem:[%s254 + $0x10] sm:$0xff] %v715
          %732 = vst [vmem:[%s254 + $0x18] sm:$0xff] %v716
          %733 = vst [vmem:[%s254 + $0x20] sm:$0xff] %v717
          %734 = vst [vmem:[%s254 + $0x28] sm:$0xff] %v718
          %735 = vst [vmem:[%s254 + $0x30] sm:$0xff] %v719
          %736 = vst [vmem:[%s254 + $0x38] sm:$0xff] %v720
          %737 = vst [vmem:[%s254 + $0x40] sm:$0xff] %v721
          %738 = vst [vmem:[%s254 + $0x48] sm:$0xff] %v722
          %739 = vst [vmem:[%s254 + $0x50] sm:$0xff] %v723
          %740 = vst [vmem:[%s254 + $0x58] sm:$0xff] %v724
          %741 = vst [vmem:[%s254 + $0x60] sm:$0xff] %v725
          %742 = vst [vmem:[%s254 + $0x68] sm:$0xff] %v726
          %743 = vst [vmem:[%s254 + $0x70] sm:$0xff] %v727
          %744 = vst [vmem:[%s254 + $0x78] sm:$0xff] %v728
        $region48: #{tpu_custom_call.1} parent=31 // pred_fallthru
          _
        %s745 = sand.u32 %s132, 1
        %s746 = scalar_lea.sflag [#allocation4], %s745
        %s747 = sand.u32 %s132, 1
        %s748 = smul.addr %s747, 128
        %s749 = scalar_lea.vmem [#allocation7], %s748
        // Predicated region
        $region49: #{tpu_custom_call.1} parent=31 // pred_check
          %p750 = pneg %p142
        $region50: #{tpu_custom_call.1} parent=31 // pred_check_branch
          %752 = sbr.rel (%p750) target = $region52
        $region51: #{tpu_custom_call.1} parent=31 // pred_region
          %s753 = smul.u32 16, %s26
          %s755 = ssub.s32 2048, 2048
          %756 = vsyncadd %s746, %s755
          %s757 = smul.addr %s753, 2
          %s758 = sadd.s32 %s27, %s757
          %s759 = smul.addr %s758, 128
          %s760 = scalar_lea.hbm %s3, %s759
          %s761 = sshll.u32 %s749, 4
          %s762 = int_to_ptr.vmem [resolvable:$true] %s761
          %767 = dma.vmem_to_hbm [thread:$0]  %s762, 2048, %s760, %s746, 128, 256, 8
        $region52: #{tpu_custom_call.1} parent=31 // pred_fallthru
          _
      $region32: #{tpu_custom_call.1} parent=5 // pred_fallthru
        _
      %p768 = scmp.le.s32.totalorder 2, %s16
      // Predicated region
      $region53: #{tpu_custom_call.1} parent=5 // pred_check
        %p769 = pneg %p768
      $region54: #{tpu_custom_call.1} parent=5 // pred_check_branch
        %771 = sbr.rel (%p769) target = $region56
      $region55: #{tpu_custom_call.1} parent=5 // pred_region
        %s772 = ssub.s32 %s16, 2
        // Predicated region
        $region57: #{tpu_custom_call.1} parent=55 // pred_check
          %p773 = pneg %p148
        $region58: #{tpu_custom_call.1} parent=55 // pred_check_branch
          %775 = sbr.rel (%p773) target = $region60
        $region59: #{tpu_custom_call.1} parent=55 // pred_region
          %s776 = sand.u32 %s133, 1
          %s777 = scalar_lea.sflag [#allocation4], %s776
          %s778 = sand.u32 %s133, 1
          %s779 = smul.addr %s778, 128
          %s780 = scalar_lea.vmem [#allocation7], %s779
          %781 = dma.done %s777, 2048
        $region60: #{tpu_custom_call.1} parent=55 // pred_fallthru
          _
      $region56: #{tpu_custom_call.1} parent=5 // pred_fallthru
        _
    $region6: #{tpu_custom_call.1} parent=1 // loop_footer
      %s20 = sadd.s32 1, %s16
    $region7: #{tpu_custom_call.1} parent=1 // loop_footer_branch
      %15 = sbr.rel target = $region3
    $region8: #{tpu_custom_call.1} parent=1 // loop_exit
      _
    %782 = vsyncpa [#allocation3], 1
    %s783 = scalar_lea.sflag [#allocation3], 1
    %784 = vsyncpa %s783, 1
    %785 = vsyncpa [#allocation6], 1
    %s786 = scalar_lea.sflag [#allocation6], 1
    %787 = vsyncpa %s786, 1
    %788 = vsyncpa [#allocation4], 1
    %s789 = scalar_lea.sflag [#allocation4], 1
    %790 = vsyncpa %s789, 1

</llo_original>
